<compile_context>
chip_gen: v6e
topology: v6e:2x2x1
jax: 0.10.0
libtpu: 0.0.40
codegen_flags: <defaults>
</compile_context>

<pallas_src>
import functools
from typing import NamedTuple

import jax
import jax.numpy as jnp
from jax.experimental import pallas as pl
from jax.experimental.pallas import tpu as pltpu


def _round_up(x, m):
    return (x + m - 1) // m * m


# --------------------------- Pallas kernels ---------------------------------

def _conv_mm_kernel(w_ref, p_ref, b_ref, o_ref, *, act):
    # w_ref: (Cop, K) bf16, p_ref: (1, K, tm) bf16, b_ref: (Cop, 1) f32.
    acc = jnp.dot(w_ref[...], p_ref[0], preferred_element_type=jnp.float32)
    acc = acc + b_ref[...]                     # f32 epilogue (v5e has no bf16 VPU)
    if act == "relu":
        acc = jnp.maximum(acc, 0.0)
    elif act == "tanh":
        acc = jnp.tanh(acc)
    o_ref[0] = acc.astype(o_ref.dtype)


def _conv_matmul(wmat, p_bf16, bias, act="none"):
    """wmat: (Cop, K) bf16, p: (N, K, M) bf16, bias: (Cop, 1) f32 -> (N, Cop, Mp) f32."""
    Cop, K = wmat.shape
    N, K2, M = p_bf16.shape
    assert K == K2
    Mp = _round_up(M, 128)
    if Mp != M:
        p_bf16 = jnp.pad(p_bf16, ((0, 0), (0, 0), (0, Mp - M)))
    tm = max(t for t in (512, 256, 128) if Mp % t == 0)   # lane-dense output tiles
    out = pl.pallas_call(
        functools.partial(_conv_mm_kernel, act=act),
        out_shape=jax.ShapeDtypeStruct((N, Cop, Mp), jnp.float32),
        grid=(N, Mp // tm),
        in_specs=[
            pl.BlockSpec((Cop, K), lambda n, m: (0, 0)),     # weights: fetched once
            pl.BlockSpec((1, K, tm), lambda n, m: (n, 0, m)),
            pl.BlockSpec((Cop, 1), lambda n, m: (0, 0)),
        ],
        out_specs=pl.BlockSpec((1, Cop, tm), lambda n, m: (n, 0, m)),
        compiler_params=pltpu.CompilerParams(
            dimension_semantics=("parallel", "parallel")),
    )(wmat, p_bf16, bias)
    return out


def _instnorm_kernel(*refs, act, has_skip):
    # block: (1, tc, HW). torch InstanceNorm2d(affine=False): biased var, eps=1e-5.
    if has_skip:
        x_ref, s_ref, o_ref = refs
    else:
        x_ref, o_ref = refs
    x = x_ref[0].astype(jnp.float32)
    mean = jnp.mean(x, axis=-1, keepdims=True)
    var = jnp.mean(jnp.square(x - mean), axis=-1, keepdims=True)
    y = (x - mean) * jax.lax.rsqrt(var + 1e-5)
    if act == "relu":
        y = jnp.maximum(y, 0.0)
    if has_skip:                                # fused residual add (after IN)
        y = y + s_ref[0].astype(jnp.float32)
    o_ref[0] = y.astype(o_ref.dtype)


def _pick_tc(C, HW):
    # Channel-tile so one f32 block stays small (VMEM-safe on v7x, 2-TC sharding).
    budget = 2 * 1024 * 1024
    cands = [C] + [c for c in (128, 64, 32, 16, 8) if c < C and C % c == 0]
    for tc in cands:
        if tc * HW * 4 <= budget:
            return tc
    return cands[-1]


def instance_norm_nchw(x, act="none", skip=None):
    """x: (N, C, H, W) f32; optional fused `+ skip` after the normalization."""
    N, C, H, W = x.shape
    HW = H * W
    x2 = x.reshape(N, C, HW)
    tc = _pick_tc(C, HW)
    has_skip = skip is not None
    operands = [x2]
    in_specs = [pl.BlockSpec((1, tc, HW), lambda n, c: (n, c, 0))]
    if has_skip:
        operands.append(skip.reshape(N, C, HW).astype(jnp.float32))
        in_specs.append(pl.BlockSpec((1, tc, HW), lambda n, c: (n, c, 0)))
    out = pl.pallas_call(
        functools.partial(_instnorm_kernel, act=act, has_skip=has_skip),
        out_shape=jax.ShapeDtypeStruct((N, C, HW), jnp.float32),
        grid=(N, C // tc),
        in_specs=in_specs,
        out_specs=pl.BlockSpec((1, tc, HW), lambda n, c: (n, c, 0)),
        compiler_params=pltpu.CompilerParams(
            dimension_semantics=("parallel", "parallel")),
    )(*operands)
    return out.reshape(N, C, H, W)


# --------------------------- Weight packing (once per generator) -------------

def pack_conv(w, b):
    """PyTorch Conv2d weight (Co, Ci, kh, kw), bias (Co,) -> bf16 (Cop, K) + f32 (Cop, 1)."""
    Co, Ci, kh, kw = w.shape
    K = Ci * kh * kw
    Cop = _round_up(Co, 8)                          # sublane pad only (not 128)
    wmat = jnp.zeros((Cop, K), jnp.bfloat16).at[:Co, :].set(
        w.reshape(Co, K).astype(jnp.bfloat16))
    bias = jnp.zeros((Cop, 1), jnp.float32).at[:Co, 0].set(b.astype(jnp.float32))
    return {"w": wmat, "b": bias}


def pack_conv_transpose(w, b):
    """PyTorch ConvTranspose2d(k=3, s=2, p=1, op=1) weight (Ci, Co, 3, 3) ->
    4 sub-pixel phase convolutions (1x1, 1x2, 2x1, 2x2)."""
    Ci, Co, kh, kw = w.shape
    assert kh == 3 and kw == 3
    wc = jnp.flip(w, axis=(2, 3)).transpose(1, 0, 2, 3)      # (Co, Ci, 3, 3)
    return {
        "p00": pack_conv(wc[:, :, 1:2, 1:2], b),
        "p01": pack_conv(wc[:, :, 1:2, 0:3:2], b),
        "p10": pack_conv(wc[:, :, 0:3:2, 1:2], b),
        "p11": pack_conv(wc[:, :, 0:3:2, 0:3:2], b),
    }


def pack_generator_params(p, n_res_blocks):
    return {
        "c1": pack_conv(p["c1_w"], p["c1_b"]),
        "c2": pack_conv(p["c2_w"], p["c2_b"]),
        "c3": pack_conv(p["c3_w"], p["c3_b"]),
        "u1": pack_conv_transpose(p["u1_w"], p["u1_b"]),
        "u2": pack_conv_transpose(p["u2_w"], p["u2_b"]),
        "co": pack_conv(p["co_w"], p["co_b"]),
        "res": [{"c1": pack_conv(p[f"r{i}_w1"], p[f"r{i}_b1"]),
                 "c2": pack_conv(p[f"r{i}_w2"], p[f"r{i}_b2"])}
                for i in range(n_res_blocks)],
    }


# --------------------------- Conv wrappers ------------------------------------

def conv_apply(pk, x, Co, kh, kw, stride=1, pad=0, pad_mode="zero", act="none"):
    """x: (N, C, H, W) f32.  Im2col (NCHW, no transposes) + MXU matmul with fused
    bias / activation epilogue.  Returns (N, Co, Ho, Wo) f32."""
    if pad > 0:
        mode = "reflect" if pad_mode == "reflect" else "constant"
        x = jnp.pad(x, ((0, 0), (0, 0), (pad, pad), (pad, pad)), mode=mode)
    N, C, H, W = x.shape
    Ho = (H - kh) // stride + 1
    Wo = (W - kw) // stride + 1
    cols = []
    for a in range(kh):
        for c in range(kw):
            cols.append(x[:, :, a:a + stride * Ho:stride, c:c + stride * Wo:stride])
    # (N, C, kh*kw, Ho, Wo) -> (N, K, Ho*Wo): contiguous reshapes only.
    patches = jnp.stack(cols, axis=2).reshape(N, C * kh * kw, Ho * Wo)
    out = _conv_matmul(pk["w"], patches.astype(jnp.bfloat16), pk["b"], act=act)
    M = Ho * Wo
    if out.shape[1] != Co or out.shape[2] != M:
        out = out[:, :Co, :M]
    return out.reshape(N, Co, Ho, Wo)


def conv_transpose_up2(pk, x, Co):
    """ConvTranspose2d(k=3, stride=2, pad=1, output_pad=1) via sub-pixel phases:
    out[:, :, r::2, c::2] = small_conv_{r,c}(x) — no zero-dilated input."""
    N, C, H, W = x.shape
    xp = jnp.pad(x, ((0, 0), (0, 0), (0, 1), (0, 1)))
    o00 = conv_apply(pk["p00"], x, Co, kh=1, kw=1)
    o01 = conv_apply(pk["p01"], xp[:, :, :H, :], Co, kh=1, kw=2)
    o10 = conv_apply(pk["p10"], xp[:, :, :, :W], Co, kh=2, kw=1)
    o11 = conv_apply(pk["p11"], xp, Co, kh=2, kw=2)
    row0 = jnp.stack([o00, o01], axis=-1)          # (N, Co, H, W, 2)
    row1 = jnp.stack([o10, o11], axis=-1)
    out = jnp.stack([row0, row1], axis=3)          # (N, Co, H, 2, W, 2)
    return out.reshape(N, Co, 2 * H, 2 * W)


# --------------------------- Generator ---------------------------------------

class GenCfg(NamedTuple):
    in_nc: int
    out_nc: int
    ngf: int
    n_res_blocks: int


def init_generator_params(key, in_nc, out_nc, ngf, n_res_blocks):
    """init_weights-style init: conv weights ~ N(0, 0.02), bias = 0 (PyTorch shapes)."""
    def w(k, shape):
        return jax.random.normal(k, shape, jnp.float32) * 0.02

    keys = iter(jax.random.split(key, 7 + 2 * n_res_blocks))
    p = {
        "c1_w": w(next(keys), (ngf, in_nc, 7, 7)), "c1_b": jnp.zeros((ngf,), jnp.float32),
        "c2_w": w(next(keys), (2 * ngf, ngf, 3, 3)), "c2_b": jnp.zeros((2 * ngf,), jnp.float32),
        "c3_w": w(next(keys), (4 * ngf, 2 * ngf, 3, 3)), "c3_b": jnp.zeros((4 * ngf,), jnp.float32),
        "u1_w": w(next(keys), (4 * ngf, 2 * ngf, 3, 3)), "u1_b": jnp.zeros((2 * ngf,), jnp.float32),
        "u2_w": w(next(keys), (2 * ngf, ngf, 3, 3)), "u2_b": jnp.zeros((ngf,), jnp.float32),
        "co_w": w(next(keys), (out_nc, ngf, 7, 7)), "co_b": jnp.zeros((out_nc,), jnp.float32),
    }
    for i in range(n_res_blocks):
        p[f"r{i}_w1"] = w(next(keys), (4 * ngf, 4 * ngf, 3, 3))
        p[f"r{i}_b1"] = jnp.zeros((4 * ngf,), jnp.float32)
        p[f"r{i}_w2"] = w(next(keys), (4 * ngf, 4 * ngf, 3, 3))
        p[f"r{i}_b2"] = jnp.zeros((4 * ngf,), jnp.float32)
    return p


def generator_forward(pk, x, cfg):
    ngf = cfg.ngf
    # c7s1-ngf
    h = conv_apply(pk["c1"], x, Co=ngf, kh=7, kw=7, stride=1, pad=3, pad_mode="reflect")
    h = instance_norm_nchw(h, act="relu")
    # downsampling
    h = conv_apply(pk["c2"], h, Co=2 * ngf, kh=3, kw=3, stride=2, pad=1)
    h = instance_norm_nchw(h, act="relu")
    h = conv_apply(pk["c3"], h, Co=4 * ngf, kh=3, kw=3, stride=2, pad=1)
    h = instance_norm_nchw(h, act="relu")
    # residual blocks (IN of the 2nd conv fused with the skip-add)
    # TODO(synk): dropout inside ResnetBlock skipped (params.use_dropout assumed False).
    for rp in pk["res"]:
        r = conv_apply(rp["c1"], h, Co=4 * ngf, kh=3, kw=3, stride=1, pad=1, pad_mode="reflect")
        r = instance_norm_nchw(r, act="relu")
        r = conv_apply(rp["c2"], r, Co=4 * ngf, kh=3, kw=3, stride=1, pad=1, pad_mode="reflect")
        h = instance_norm_nchw(r, act="none", skip=h)
    # upsampling (phase-decomposed ConvTranspose)
    h = conv_transpose_up2(pk["u1"], h, Co=2 * ngf)
    h = instance_norm_nchw(h, act="relu")
    h = conv_transpose_up2(pk["u2"], h, Co=ngf)
    h = instance_norm_nchw(h, act="relu")
    # c7s1-out_nc with tanh fused into the conv epilogue
    return conv_apply(pk["co"], h, Co=cfg.out_nc, kh=7, kw=7, stride=1, pad=3,
                      pad_mode="reflect", act="tanh")


# --------------------------- CycleGAN.forward --------------------------------

def make_cyclegan_forward(cfg_s, cfg_t):
    def fwd(gs_packed, gt_packed, real_S, real_T):
        fake_S = generator_forward(gs_packed, real_T, cfg_s)
        recons_T = generator_forward(gt_packed, fake_S, cfg_t)
        fake_T = generator_forward(gt_packed, real_S, cfg_t)
        recons_S = generator_forward(gs_packed, fake_T, cfg_s)
        return fake_S, fake_T, recons_S, recons_T
    return jax.jit(fwd)


# TODO(synk): train_D / train_G / optimizers / losses / ImageBuffer are training-time
# machinery outside forward() and are not implemented here.


def _ref_conv_transpose(x, w, b):
    """f32 reference for ConvTranspose2d(k=3,s=2,p=1,op=1) via zero-dilation (XLA)."""
    N, C, H, W = x.shape
    Ci, Co, kh, kw = w.shape
    xd = jnp.zeros((N, C, 2 * H - 1, 2 * W - 1), x.dtype).at[:, :, ::2, ::2].set(x)
    xd = jnp.pad(xd, ((0, 0), (0, 0), (1, 2), (1, 2)))
    wc = jnp.flip(w, (2, 3)).transpose(1, 0, 2, 3)
    out = jax.lax.conv_general_dilated(
        xd, wc, (1, 1), "VALID", dimension_numbers=("NCHW", "OIHW", "NCHW"))
    return out + b.reshape(1, Co, 1, 1)


if __name__ == "__main__":
    key = jax.random.PRNGKey(0)
    k_gs, k_gt, k_s, k_t, k_chk = jax.random.split(key, 5)

    # small synthetic config: S_nc == T_nc as asserted in the module
    S_nc = T_nc = 3
    ngf = 8
    n_res_blocks = 2
    batch, H, W = 2, 16, 16

    gs_raw = init_generator_params(k_gs, T_nc, S_nc, ngf, n_res_blocks)   # G_S: T -> S
    gt_raw = init_generator_params(k_gt, S_nc, T_nc, ngf, n_res_blocks)   # G_T: S -> T
    gs_packed = pack_generator_params(gs_raw, n_res_blocks)               # packed once
    gt_packed = pack_generator_params(gt_raw, n_res_blocks)

    cfg_s = GenCfg(in_nc=T_nc, out_nc=S_nc, ngf=ngf, n_res_blocks=n_res_blocks)
    cfg_t = GenCfg(in_nc=S_nc, out_nc=T_nc, ngf=ngf, n_res_blocks=n_res_blocks)

    real_S = jax.random.normal(k_s, (batch, S_nc, H, W), jnp.float32)
    real_T = jax.random.normal(k_t, (batch, T_nc, H, W), jnp.float32)

    # self-check: phase-decomposed ConvTranspose == zero-dilated reference
    kx, kw_ = jax.random.split(k_chk)
    xc = jax.random.normal(kx, (2, 4 * ngf, 4, 4), jnp.float32)
    wt = jax.random.normal(kw_, (4 * ngf, 2 * ngf, 3, 3), jnp.float32) * 0.02
    bt = jax.random.normal(jax.random.PRNGKey(7), (2 * ngf,), jnp.float32) * 0.02
    got = conv_transpose_up2(pack_conv_transpose(wt, bt), xc, Co=2 * ngf)
    ref = _ref_conv_transpose(xc, wt, bt)
    assert got.shape == ref.shape
    assert bool(jnp.max(jnp.abs(got - ref)) < 2e-2)

    fwd = make_cyclegan_forward(cfg_s, cfg_t)
    fake_S, fake_T, recons_S, recons_T = fwd(gs_packed, gt_packed, real_S, real_T)
    jax.block_until_ready((fake_S, fake_T, recons_S, recons_T))

    assert fake_S.shape == (batch, S_nc, H, W)
    assert fake_T.shape == (batch, T_nc, H, W)
    assert recons_S.shape == (batch, S_nc, H, W)
    assert recons_T.shape == (batch, T_nc, H, W)
    assert bool(jnp.all(jnp.isfinite(fake_S)))
    assert bool(jnp.all(jnp.abs(fake_S) <= 1.0))
    assert bool(jnp.all(jnp.isfinite(recons_S)))

    print("KERNEL_OK")
</pallas_src>

<mosaic_0001>
module attributes {stable_mosaic.version = 11 : i64} {
  func.func @_conv_mm_kernel(%arg0: i32, %arg1: i32, %arg2: memref<16x32xbf16, #tpu.memory_space<vmem>>, %arg3: memref<1x32x128xbf16, #tpu.memory_space<vmem>>, %arg4: memref<16x1xf32, #tpu.memory_space<vmem>>, %arg5: memref<1x16x128xf32, #tpu.memory_space<vmem>>) attributes {dimension_semantics = [#tpu.dimension_semantics<parallel>, #tpu.dimension_semantics<parallel>], iteration_bounds = array<i64: 2, 1>, scalar_prefetch = 0 : i64, scratch_operands = 0 : i64, tpu.core_type = #tpu.core_type<tc>, window_params = [{pipeline_mode = #tpu.pipeline_mode<synchronous>, transform_indices = @transform_0, window_bounds = array<i64: 16, 32>}, {transform_indices = @transform_1, window_bounds = array<i64: 1, 32, 128>}, {pipeline_mode = #tpu.pipeline_mode<synchronous>, transform_indices = @transform_2, window_bounds = array<i64: 16, 1>}, {transform_indices = @transform_3, window_bounds = array<i64: 1, 16, 128>}]} {
    %c0 = arith.constant 0 : index
    %c0_0 = arith.constant 0 : index
    %0 = vector.load %arg2[%c0, %c0_0] : memref<16x32xbf16, #tpu.memory_space<vmem>>, vector<16x32xbf16>
    %c0_1 = arith.constant 0 : index
    %c0_2 = arith.constant 0 : index
    %c0_3 = arith.constant 0 : index
    %1 = vector.load %arg3[%c0_1, %c0_2, %c0_3] : memref<1x32x128xbf16, #tpu.memory_space<vmem>>, vector<1x32x128xbf16>
    %2 = vector.shape_cast %1 : vector<1x32x128xbf16> to vector<32x128xbf16>
    %cst = arith.constant dense<0.000000e+00> : vector<16x128xf32>
    %3 = tpu.matmul %0, %2, %cst {dimension_numbers = #tpu.dot_dimension_numbers<[1], [0], [0], [1], [0, 0, 1, 1], [], []>} : vector<16x32xbf16>, vector<32x128xbf16>, vector<16x128xf32> -> vector<16x128xf32>
    %c0_4 = arith.constant 0 : index
    %c0_5 = arith.constant 0 : index
    %4 = vector.load %arg4[%c0_4, %c0_5] : memref<16x1xf32, #tpu.memory_space<vmem>>, vector<16x1xf32>
    %5 = vector.broadcast %4 : vector<16x1xf32> to vector<16x128xf32>
    %6 = arith.addf %3, %5 : vector<16x128xf32>
    %c0_6 = arith.constant 0 : index
    %c0_7 = arith.constant 0 : index
    %c0_8 = arith.constant 0 : index
    %7 = vector.load %arg5[%c0_6, %c0_7, %c0_8] : memref<1x16x128xf32, #tpu.memory_space<vmem>>, vector<1x16x128xf32>
    %8 = vector.shape_cast %7 : vector<1x16x128xf32> to vector<16x128xf32>
    %9 = vector.shape_cast %6 : vector<16x128xf32> to vector<1x16x128xf32>
    tpu.vector_store %arg5[%c0_6, %c0_7, %c0_8], %9 {strides = array<i32>} : memref<1x16x128xf32, #tpu.memory_space<vmem>>, vector<1x16x128xf32>,
    return
  }
  func.func @transform_0(%arg0: i32, %arg1: i32) -> (i32, i32) {
    %c0_i32 = arith.constant 0 : i32
    %c0_i32_0 = arith.constant 0 : i32
    %c0_i32_1 = arith.constant 0 : i32
    return %c0_i32, %c0_i32_0 : i32, i32
  }
  func.func @transform_1(%arg0: i32, %arg1: i32) -> (i32, i32, i32) {
    %c0_i32 = arith.constant 0 : i32
    %c0_i32_0 = arith.constant 0 : i32
    return %arg0, %c0_i32, %arg1 : i32, i32, i32
  }
  func.func @transform_2(%arg0: i32, %arg1: i32) -> (i32, i32) {
    %c0_i32 = arith.constant 0 : i32
    %c0_i32_0 = arith.constant 0 : i32
    %c0_i32_1 = arith.constant 0 : i32
    return %c0_i32, %c0_i32_0 : i32, i32
  }
  func.func @transform_3(%arg0: i32, %arg1: i32) -> (i32, i32, i32) {
    %c0_i32 = arith.constant 0 : i32
    %c0_i32_0 = arith.constant 0 : i32
    return %arg0, %c0_i32, %arg1 : i32, i32, i32
  }
}

</mosaic_0001>

<llo_original>
// kernel: tpu_custom_call.1
$region0: #{tpu_custom_call.1}
  #allocation0 [shape = 'u32[]', space=smem, size = 0x4, offset = 0x4, fixed_abs, tag = 'smem constant byte address 0x4 - core index']
  #allocation1 [shape = 'u32[144,128]{1,0:T(1,128)}', space=vmem, size = 0x12000, scoped, tag = 'internal scratch']
  %s0 = inlined_call_operand.vmem [shape: bf16[16,32], index: 0, kind: input, shape index: {}]
  %s1 = inlined_call_operand.hbm [shape: bf16[2,32,128], index: 1, kind: input, shape index: {}]
  %s2 = inlined_call_operand.vmem [shape: f32[16,1], index: 2, kind: input, shape index: {}]
  %s3 = inlined_call_operand.hbm [shape: f32[2,16,128], index: 3, kind: output, shape index: {}]
  %s4 = sld [smem:[#allocation0]]
  $region49: #{tpu_custom_call.1} parent=0
    _
  %s6 = ssub.s32 1, %s4
  %s7 = scalar_select 0, %s6, %s4
  $region1: #{tpu_custom_call.1} parent=0
    #allocation2 [shape = 'u8[16384]{0}', space=vmem, size = 0x4000, scoped, tag = 'input window, operand 1']
    #allocation3 [shape = 's32[2]{0}', space=sflag, size = 0x8, scoped, tag = 'scoped memory for tpu_custom_call.1']
    #allocation4 [shape = 's32[2]{0}', space=sflag, size = 0x8, scoped, tag = 'scoped memory for tpu_custom_call.1']
    #allocation5 [shape = 'u8[16384]{0}', space=vmem, size = 0x4000, scoped, tag = 'output window, operand 0']
    %8 = vsyncpa [#allocation3], 0
    %s9 = scalar_lea.sflag [#allocation3], 1
    %10 = vsyncpa %s9, 0
    %11 = vsyncpa [#allocation4], 0
    %s12 = scalar_lea.sflag [#allocation4], 1
    %13 = vsyncpa %s12, 0
    loop: start=0, step=1, limit=4
    $region2: #{tpu_custom_call.1} parent=1 // loop_pre_header
      _
    $region3: #{tpu_custom_call.1} parent=1 // loop_header
      %s15 = sphi 0, %s19
      %p16 = scmp.ge.s32.totalorder %s15, 4
      %s22 = sphi 0, %s34
      %s23 = sphi 0, %s30
      %s24 = sphi 0, %s22
      %s25 = sphi 0, %s23
      %s26 = sphi 0, %s24
      %s27 = sphi 0, %s25
      %s35 = sphi 0, %s35
      %s37 = sphi 0, %s35
      %s38 = sphi 0, %s37
      %s52 = sphi 0, %s38
      %s60 = sphi 0, %s62
      %s63 = sphi 0, %s60
      %s64 = sphi 0, %s63
      %s80 = sphi 0, %s64
      %s84 = sphi 0, %s84
      %s86 = sphi 0, %s84
      %s87 = sphi 0, %s86
      %s101 = sphi 0, %s87
      %s109 = sphi 0, %s111
      %s112 = sphi 0, %s109
      %s113 = sphi 0, %s112
      %s129 = sphi 0, %s113
    $region4: #{tpu_custom_call.1} parent=1 // loop_header_branch
      %18 = sbr.rel (%p16) target = $region8
    $region5: #{tpu_custom_call.1} parent=1 // loop_body
      %s20 = ssub.s32 %s15, 1
      %s21 = ssub.s32 %s15, 2
      %s28 = sadd.s32 1, %s23
      %p29 = scmp.ge.s32.totalorder %s28, 1
      %s30 = scalar_select %p29, 0, %s28
      %s31 = sadd.s32 1, %s22
      %s32 = scalar_select %p29, %s31, %s22
      %p33 = scmp.ge.s32.totalorder %s32, 2
      %s34 = scalar_select %p33, 0, %s32
      %s36 = sadd.s32 %s35, 1
      %p39 = scmp.eq.s32.totalorder %s15, 1
      %p40 = scmp.ne.s32.totalorder %s35, %s37
      %p41 = scmp.eq.s32.totalorder %s15, 0
      %p42 = por %p40, %p41
      %p43 = scmp.ne.s32.totalorder %s35, %s37
      %p44 = scmp.eq.s32.totalorder %s20, 1
      %p45 = por %p43, %p44
      %p46 = scmp.ne.s32.totalorder %s37, %s38
      %p47 = scmp.eq.s32.totalorder %s20, 0
      %p48 = por %p46, %p47
      %p49 = scmp.ne.s32.totalorder %s37, %s38
      %p50 = scmp.eq.s32.totalorder %s21, 1
      %p51 = por %p49, %p50
      %p53 = scmp.ne.s32.totalorder %s38, %s52
      %p54 = scmp.eq.s32.totalorder %s21, 0
      %p55 = por %p53, %p54
      %s56 = ssub.s32 %s22, %s34
      %s57 = ssub.s32 %s23, %s30
      %s58 = sor.u32 %s56, %s57
      %p59 = scmp.eq.s32.totalorder %s58, 0
      %s61 = sadd.s32 %s60, 1
      %s62 = scalar_select %p59, %s60, %s61
      %p65 = pneg %p59
      %p66 = scmp.eq.s32.totalorder %s15, 1
      %p67 = por %p65, %p66
      %p68 = scmp.ne.s32.totalorder %s60, %s63
      %p69 = scmp.eq.s32.totalorder %s15, 0
      %p70 = por %p68, %p69
      %p71 = scmp.ne.s32.totalorder %s60, %s63
      %p72 = scmp.eq.s32.totalorder %s20, 1
      %p73 = por %p71, %p72
      %p74 = scmp.ne.s32.totalorder %s63, %s64
      %p75 = scmp.eq.s32.totalorder %s20, 0
      %p76 = por %p74, %p75
      %p77 = scmp.ne.s32.totalorder %s63, %s64
      %p78 = scmp.eq.s32.totalorder %s21, 1
      %p79 = por %p77, %p78
      %p81 = scmp.ne.s32.totalorder %s64, %s80
      %p82 = scmp.eq.s32.totalorder %s21, 0
      %p83 = por %p81, %p82
      %s85 = sadd.s32 %s84, 1
      %p88 = scmp.eq.s32.totalorder %s15, 1
      %p89 = scmp.ne.s32.totalorder %s84, %s86
      %p90 = scmp.eq.s32.totalorder %s15, 0
      %p91 = por %p89, %p90
      %p92 = scmp.ne.s32.totalorder %s84, %s86
      %p93 = scmp.eq.s32.totalorder %s20, 1
      %p94 = por %p92, %p93
      %p95 = scmp.ne.s32.totalorder %s86, %s87
      %p96 = scmp.eq.s32.totalorder %s20, 0
      %p97 = por %p95, %p96
      %p98 = scmp.ne.s32.totalorder %s86, %s87
      %p99 = scmp.eq.s32.totalorder %s21, 1
      %p100 = por %p98, %p99
      %p102 = scmp.ne.s32.totalorder %s87, %s101
      %p103 = scmp.eq.s32.totalorder %s21, 0
      %p104 = por %p102, %p103
      %s105 = ssub.s32 %s22, %s34
      %s106 = ssub.s32 %s23, %s30
      %s107 = sor.u32 %s105, %s106
      %p108 = scmp.eq.s32.totalorder %s107, 0
      %s110 = sadd.s32 %s109, 1
      %s111 = scalar_select %p108, %s109, %s110
      %p114 = pneg %p108
      %p115 = scmp.eq.s32.totalorder %s15, 1
      %p116 = por %p114, %p115
      %p117 = scmp.ne.s32.totalorder %s109, %s112
      %p118 = scmp.eq.s32.totalorder %s15, 0
      %p119 = por %p117, %p118
      %p120 = scmp.ne.s32.totalorder %s109, %s112
      %p121 = scmp.eq.s32.totalorder %s20, 1
      %p122 = por %p120, %p121
      %p123 = scmp.ne.s32.totalorder %s112, %s113
      %p124 = scmp.eq.s32.totalorder %s20, 0
      %p125 = por %p123, %p124
      %p126 = scmp.ne.s32.totalorder %s112, %s113
      %p127 = scmp.eq.s32.totalorder %s21, 1
      %p128 = por %p126, %p127
      %p130 = scmp.ne.s32.totalorder %s113, %s129
      %p131 = scmp.eq.s32.totalorder %s21, 0
      %p132 = por %p130, %p131
      %p133 = scmp.le.s32.totalorder 1, %s15
      %p134 = scmp.lt.s32.totalorder %s15, 3
      %p135 = pnand %p133, %p134
      %p136 = pneg %p135
      // Predicated region
      $region9: #{tpu_custom_call.1} parent=5 // pred_check
        _
      $region10: #{tpu_custom_call.1} parent=5 // pred_check_branch
        %138 = sbr.rel (%p135) target = $region12
      $region11: #{tpu_custom_call.1} parent=5 // pred_region
        %s139 = ssub.s32 %s15, 1
        // Predicated region
        $region13: #{tpu_custom_call.1} parent=11 // pred_check
          %p140 = pneg %p48
        $region14: #{tpu_custom_call.1} parent=11 // pred_check_branch
          %142 = sbr.rel (%p140) target = $region16
        $region15: #{tpu_custom_call.1} parent=11 // pred_region
          _
        $region16: #{tpu_custom_call.1} parent=11 // pred_fallthru
          _
        // Predicated region
        $region17: #{tpu_custom_call.1} parent=11 // pred_check
          %p143 = pneg %p97
        $region18: #{tpu_custom_call.1} parent=11 // pred_check_branch
          %145 = sbr.rel (%p143) target = $region20
        $region19: #{tpu_custom_call.1} parent=11 // pred_region
          _
        $region20: #{tpu_custom_call.1} parent=11 // pred_fallthru
          _
      $region12: #{tpu_custom_call.1} parent=5 // pred_fallthru
        _
      %p146 = scmp.lt.s32.totalorder %s15, 2
      // Predicated region
      $region21: #{tpu_custom_call.1} parent=5 // pred_check
        %p147 = pneg %p146
      $region22: #{tpu_custom_call.1} parent=5 // pred_check_branch
        %149 = sbr.rel (%p147) target = $region24
      $region23: #{tpu_custom_call.1} parent=5 // pred_region
        // Predicated region
        $region25: #{tpu_custom_call.1} parent=23 // pred_check
          %p150 = pneg %p70
        $region26: #{tpu_custom_call.1} parent=23 // pred_check_branch
          %152 = sbr.rel (%p150) target = $region28
        $region27: #{tpu_custom_call.1} parent=23 // pred_region
          %s153 = sand.u32 %s60, 1
          %s154 = scalar_lea.sflag [#allocation3], %s153
          %s155 = sand.u32 %s60, 1
          %s156 = smul.addr %s155, 16
          %s157 = scalar_lea.vmem [#allocation2], %s156
          %s159 = ssub.s32 256, 256
          %160 = vsyncadd %s154, %s159
          %s161 = smul.addr %s22, 4
          %s162 = sadd.s32 %s23, %s161
          %s163 = smul.addr %s162, 64
          %s164 = scalar_lea.hbm %s1, %s163
          %s165 = sshll.u32 %s157, 4
          %s166 = int_to_ptr.vmem [resolvable:$true] %s165
          %171 = dma.hbm_to_vmem [thread:$0]  %s164, 256, %s166, %s154, 64, 64, 4
        $region28: #{tpu_custom_call.1} parent=23 // pred_fallthru
          _
      $region24: #{tpu_custom_call.1} parent=5 // pred_fallthru
        _
      %p172 = scmp.le.s32.totalorder 1, %s15
      %p173 = scmp.lt.s32.totalorder %s15, 3
      %p174 = pnand %p172, %p173
      %p175 = pneg %p174
      // Predicated region
      $region29: #{tpu_custom_call.1} parent=5 // pred_check
        _
      $region30: #{tpu_custom_call.1} parent=5 // pred_check_branch
        %177 = sbr.rel (%p174) target = $region32
      $region31: #{tpu_custom_call.1} parent=5 // pred_region
        %s178 = ssub.s32 %s15, 1
        %s179 = sand.u32 %s63, 1
        %s180 = scalar_lea.sflag [#allocation3], %s179
        %s181 = sand.u32 %s63, 1
        %s182 = smul.addr %s181, 16
        %s183 = scalar_lea.vmem [#allocation2], %s182
        // Predicated region
        $region33: #{tpu_custom_call.1} parent=31 // pred_check
          %p184 = pneg %p76
        $region34: #{tpu_custom_call.1} parent=31 // pred_check_branch
          %186 = sbr.rel (%p184) target = $region36
        $region35: #{tpu_custom_call.1} parent=31 // pred_region
          %187 = dma.done %s180, 256
        $region36: #{tpu_custom_call.1} parent=31 // pred_fallthru
          _
        %p188 = pneg %p48
        %p189 = pneg %p45
        %s190 = sand.u32 %s63, 1
        %s191 = scalar_lea.sflag [#allocation3], %s190
        %s192 = sand.u32 %s63, 1
        %s193 = smul.addr %s192, 16
        %s194 = scalar_lea.vmem [#allocation2], %s193
        %p195 = pneg %p76
        %p196 = pneg %p73
        %p197 = pneg %p97
        %p198 = pneg %p94
        %p199 = pneg %p125
        %p200 = pneg %p122
        %s201 = sand.u32 %s112, 1
        %s202 = scalar_lea.sflag [#allocation4], %s201
        %s203 = sand.u32 %s112, 1
        %s204 = smul.addr %s203, 16
        %s205 = scalar_lea.vmem [#allocation5], %s204
        %v207 = vld [vmem:[%s0] sm:$0xf]
        %v208 = vld [vmem:[%s0 + $0x4] sm:$0xf]
        %v209 = vld [vmem:[%s183] sm:$0xf]
        %v210 = vld [vmem:[%s183 + $0x4] sm:$0xf]
        %v211 = vld [vmem:[%s183 + $0x8] sm:$0xf]
        %v212 = vld [vmem:[%s183 + $0xc] sm:$0xf]
        %v213 = vld [vmem:[%s2] sm:$0xff]
        %v214 = vld [vmem:[%s2 + $0x8] sm:$0xff]
        %216 = vset.pattern.permute.xlu0 0
        %217 = vperm.xlu0 %216, %v213
        %v218 = vpop.permute.xlu0 %217
        %221 = vset.pattern.permute.xlu0 0
        %222 = vperm.xlu0 %221, %v214
        %v223 = vpop.permute.xlu0 %222
        %v227 = vunpack.c.l.b16 %v207
        %v228 = vunpack.c.l.b16 %v208
        %v229 = vpack.c.b16 %v228, %v227
        %v234 = vunpack.c.l.b16 %v209
        %v235 = vunpack.c.l.b16 %v210
        %v236 = vunpack.c.l.b16 %v211
        %v237 = vunpack.c.l.b16 %v212
        %v238 = vpack.c.b16 %v235, %v234
        %v239 = vpack.c.b16 %v237, %v236
        %vm242 = vcmask 261120
        %v244 = vsel %vm242, %v229, 0
        %246 = vmatprep.subr.bf16.mxu0 0
        %247 = vmatpush1.bf16.msra.mxu0 0
        %248 = vmatprep.subr.bf16.mxu0 0
        %249 = vmatpush1.bf16.msra.mxu0 0
        %250 = vmatprep.subr.bf16.mxu0 0
        %251 = vmatpush1.bf16.msra.mxu0 0
        %252 = vmatprep.subr.bf16.mxu0 0
        %253 = vmatpush1.bf16.msra.mxu0 0
        %254 = vmatprep.subr.bf16.mxu0 0
        %255 = vmatpush1.bf16.msra.mxu0 0
        %256 = vmatprep.subr.bf16.mxu0 0
        %257 = vmatpush1.bf16.msra.mxu0 0
        %258 = vmatprep.subr.bf16.mxu0 0
        %259 = vmatpush1.bf16.msra.mxu0 %v239
        %260 = vmatprep.subr.bf16.mxu0 0
        %261 = vmatpush1.bf16.msra.mxu0 %v238
        %262 = vmatprep.subr.bf16.mxu0 0
        %263 = vmatpush2.bf16.msra.mxu0 0
        %264 = vmatprep.subr.bf16.mxu0 0
        %265 = vmatpush2.bf16.msra.mxu0 0
        %266 = vmatprep.subr.bf16.mxu0 0
        %267 = vmatpush2.bf16.msra.mxu0 0
        %268 = vmatprep.subr.bf16.mxu0 0
        %269 = vmatpush2.bf16.msra.mxu0 0
        %270 = vmatprep.subr.bf16.mxu0 0
        %271 = vmatpush2.bf16.msra.mxu0 0
        %272 = vmatprep.subr.bf16.mxu0 0
        %273 = vmatpush2.bf16.msra.mxu0 0
        %274 = vmatprep.subr.bf16.mxu0 0
        %275 = vmatpush2.bf16.msra.mxu0 0
        %276 = vmatprep.subr.bf16.mxu0 0
        %277 = vmatpush2.bf16.msra.mxu0 0
        %278 = vmatprep.mubr.bf16.mxu0 0
        %279 = vmatmul.mubr.bf16.gmra.mxu0 %v244
        %v280 = vpop.f32.mrf.mxu0
        %v281 = vadd.f32 %v218, %v280
        %v282 = vpop.f32.mrf.mxu0
        %v283 = vpop.f32.mrf.mxu0
        %v284 = vadd.f32 %v223, %v283
        %v285 = vpop.f32.mrf.mxu0
        %286 = vdwg.mxu0
        %287 = vst [vmem:[%s205] sm:$0xff] %v281
        %288 = vst [vmem:[%s205 + $0x8] sm:$0xff] %v284
        %s289 = sand.u32 %s112, 1
        %s290 = scalar_lea.sflag [#allocation4], %s289
        %s291 = sand.u32 %s112, 1
        %s292 = smul.addr %s291, 16
        %s293 = scalar_lea.vmem [#allocation5], %s292
        // Predicated region
        $region37: #{tpu_custom_call.1} parent=31 // pred_check
          %p294 = pneg %p122
        $region38: #{tpu_custom_call.1} parent=31 // pred_check_branch
          %296 = sbr.rel (%p294) target = $region40
        $region39: #{tpu_custom_call.1} parent=31 // pred_region
          %s298 = ssub.s32 256, 256
          %299 = vsyncadd %s290, %s298
          %s300 = smul.addr %s24, 2
          %s301 = sadd.s32 %s25, %s300
          %s302 = smul.addr %s301, 128
          %s303 = scalar_lea.hbm %s3, %s302
          %s304 = sshll.u32 %s293, 4
          %s305 = int_to_ptr.vmem [resolvable:$true] %s304
          %310 = dma.vmem_to_hbm [thread:$0]  %s305, 256, %s303, %s290, 128, 128, 8
        $region40: #{tpu_custom_call.1} parent=31 // pred_fallthru
          _
      $region32: #{tpu_custom_call.1} parent=5 // pred_fallthru
        _
      %p311 = scmp.le.s32.totalorder 2, %s15
      // Predicated region
      $region41: #{tpu_custom_call.1} parent=5 // pred_check
        %p312 = pneg %p311
      $region42: #{tpu_custom_call.1} parent=5 // pred_check_branch
        %314 = sbr.rel (%p312) target = $region44
      $region43: #{tpu_custom_call.1} parent=5 // pred_region
        %s315 = ssub.s32 %s15, 2
        // Predicated region
        $region45: #{tpu_custom_call.1} parent=43 // pred_check
          %p316 = pneg %p128
        $region46: #{tpu_custom_call.1} parent=43 // pred_check_branch
          %318 = sbr.rel (%p316) target = $region48
        $region47: #{tpu_custom_call.1} parent=43 // pred_region
          %s319 = sand.u32 %s113, 1
          %s320 = scalar_lea.sflag [#allocation4], %s319
          %s321 = sand.u32 %s113, 1
          %s322 = smul.addr %s321, 16
          %s323 = scalar_lea.vmem [#allocation5], %s322
          %324 = dma.done %s320, 256
        $region48: #{tpu_custom_call.1} parent=43 // pred_fallthru
          _
      $region44: #{tpu_custom_call.1} parent=5 // pred_fallthru
        _
    $region6: #{tpu_custom_call.1} parent=1 // loop_footer
      %s19 = sadd.s32 1, %s15
    $region7: #{tpu_custom_call.1} parent=1 // loop_footer_branch
      %14 = sbr.rel target = $region3
    $region8: #{tpu_custom_call.1} parent=1 // loop_exit
      _
    %325 = vsyncpa [#allocation3], 1
    %s326 = scalar_lea.sflag [#allocation3], 1
    %327 = vsyncpa %s326, 1
    %328 = vsyncpa [#allocation4], 1
    %s329 = scalar_lea.sflag [#allocation4], 1
    %330 = vsyncpa %s329, 1

</llo_original>
